<compile_context>
chip_gen: v6e
topology: v6e:2x2x1
jax: 0.10.0
libtpu: 0.0.40
codegen_flags: <defaults>
</compile_context>

<pallas_src>
import functools

import jax
import jax.numpy as jnp
from jax.experimental import pallas as pl
from jax.experimental.pallas import tpu as pltpu


def _vq_kernel(z_ref, e_ref, e2_ref, q_ref, idx_ref, sse_ref, *,
               n_valid, tile_n, mask_last):
    i = pl.program_id(0)

    z = z_ref[...]                                    # (tile_n, D) f32
    e = e_ref[...]                                    # (K, D)      f32
    K = e.shape[0]

    # dist = ||z||^2 + ||e||^2 - 2 * z @ e^T           (tile_n, K)
    # (||e||^2 is precomputed in the wrapper; ||z||^2 is kept so argmin
    #  tie-breaking matches the reference exactly.)
    z2 = jnp.sum(z * z, axis=1, keepdims=True)        # (tile_n, 1)
    ze = jnp.dot(z, e.T, preferred_element_type=jnp.float32)
    dist = z2 + e2_ref[...] - 2.0 * ze                # e2_ref: (1, K)

    # nearest codebook entry (first minimum, matches torch.argmin)
    idx = jnp.argmin(dist, axis=1).astype(jnp.int32)  # (tile_n,)

    # quantize via one-hot matmul (MXU) instead of a gather
    onehot = (jax.lax.broadcasted_iota(jnp.int32, (tile_n, K), 1)
              == idx[:, None]).astype(jnp.float32)    # (tile_n, K)
    q = jnp.dot(onehot, e, preferred_element_type=jnp.float32)  # (tile_n, D)

    diff = q - z
    # straight-through value: z + (q - z).detach()  (numerically z + diff)
    q_ref[...] = z + diff
    # lane-dense index row for this tile
    idx_ref[...] = idx[None, :]

    # per-tile partial sum of squared errors (reduced in the wrapper)
    sq = diff * diff
    if mask_last:
        last = pl.num_programs(0) - 1

        @pl.when(i < last)
        def _():
            sse_ref[...] = jnp.full((1, 128), jnp.sum(sq), dtype=jnp.float32)

        @pl.when(i == last)
        def _():
            rows = i * tile_n + jax.lax.broadcasted_iota(
                jnp.int32, (tile_n, 1), 0)
            valid = (rows < n_valid).astype(jnp.float32)   # (tile_n, 1)
            sse_ref[...] = jnp.full((1, 128), jnp.sum(sq * valid),
                                    dtype=jnp.float32)
    else:
        sse_ref[...] = jnp.full((1, 128), jnp.sum(sq), dtype=jnp.float32)


def vq_ema_forward(z, codebook, *, tile_n=512):
    """Eval-mode forward of VectorQuantizerEMA.

    Args:
      z:        (..., D) float32, channels-last.
      codebook: (K, D)   float32 embedding weight.
      tile_n:   rows per grid step (rounded up to a multiple of 128).

    Returns:
      (quantized_st, encoding_indices, vq_loss) matching the PyTorch module
      (indices are int32 instead of int64).
    """
    *lead, D = z.shape
    K, Dc = codebook.shape
    assert D == Dc, "embedding_dim mismatch"

    # tile_n must be a lane multiple so the (1, tile_n) index blocks are dense
    tile_n = max(128, ((int(tile_n) + 127) // 128) * 128)

    flat = z.reshape(-1, D).astype(jnp.float32)
    n = flat.shape[0]
    pad = (-n) % tile_n
    if pad:
        flat = jnp.concatenate([flat, jnp.zeros((pad, D), flat.dtype)], axis=0)
    n_pad = flat.shape[0]
    num_tiles = n_pad // tile_n

    cb = codebook.astype(jnp.float32)
    e2 = jnp.sum(cb * cb, axis=1)[None, :]            # (1, K), hoisted

    kernel = functools.partial(_vq_kernel, n_valid=n, tile_n=tile_n,
                               mask_last=bool(pad))

    q, idx, sse = pl.pallas_call(
        kernel,
        out_shape=(
            jax.ShapeDtypeStruct((n_pad, D), jnp.float32),        # quantized_st
            jax.ShapeDtypeStruct((1, n_pad), jnp.int32),          # indices (lane-dense)
            jax.ShapeDtypeStruct((1, 128 * num_tiles), jnp.float32),  # SSE partials
        ),
        grid_spec=pltpu.PrefetchScalarGridSpec(
            num_scalar_prefetch=0,
            grid=(num_tiles,),
            in_specs=[
                pl.BlockSpec((tile_n, D), lambda i: (i, 0)),      # z tile
                pl.BlockSpec((K, D), lambda i: (0, 0)),           # full codebook
                pl.BlockSpec((1, K), lambda i: (0, 0)),           # ||e||^2
            ],
            out_specs=(
                pl.BlockSpec((tile_n, D), lambda i: (i, 0)),      # quantized_st
                pl.BlockSpec((1, tile_n), lambda i: (0, i)),      # indices row
                pl.BlockSpec((1, 128), lambda i: (0, i)),         # SSE partial
            ),
        ),
        compiler_params=pltpu.CompilerParams(
            dimension_semantics=("parallel",)),
    )(flat, cb, e2)

    quantized_st = q[:n].reshape(z.shape)
    encoding_indices = idx[0, :n].reshape(tuple(lead))
    sse_total = jnp.sum(sse.reshape(num_tiles, 128)[:, 0])
    # e_latent_loss + q_latent_loss = 2 * mean((q - z)^2)
    vq_loss = 2.0 * sse_total / jnp.float32(n * D)
    return quantized_st, encoding_indices, vq_loss


def _reference(z, codebook):
    """Pure-JAX reference mirroring the PyTorch forward (eval mode)."""
    D = z.shape[-1]
    flat = z.reshape(-1, D)
    dist = (jnp.sum(flat ** 2, axis=1, keepdims=True)
            + jnp.sum(codebook ** 2, axis=1)
            - 2.0 * flat @ codebook.T)
    idx = jnp.argmin(dist, axis=1)
    q = codebook[idx].reshape(z.shape)
    q_st = z + (q - z)
    vq_loss = 2.0 * jnp.mean((q - z) ** 2)
    return q_st, idx.reshape(z.shape[:-1]), vq_loss


if __name__ == "__main__":
    codebook_size = 64     # K
    embedding_dim = 32     # D
    B, H, W = 2, 16, 16    # -> N = 512 flattened vectors

    key = jax.random.PRNGKey(0)
    kz, kc = jax.random.split(key)

    z = jax.random.normal(kz, (B, H, W, embedding_dim), dtype=jnp.float32)
    # nn.init.uniform_(embedding.weight, -1/K, 1/K), deterministic
    codebook = jax.random.uniform(
        kc, (codebook_size, embedding_dim),
        minval=-1.0 / codebook_size, maxval=1.0 / codebook_size,
        dtype=jnp.float32)

    q_ref, idx_ref, loss_ref = _reference(z, codebook)

    # 1) multi-tile run (4 tiles of 128 rows, parallel grid, partial SSE)
    q_st, indices, vq_loss = vq_ema_forward(z, codebook, tile_n=128)
    jax.block_until_ready((q_st, indices, vq_loss))
    assert q_st.shape == z.shape and indices.shape == (B, H, W)
    assert jnp.allclose(q_st, q_ref, atol=1e-5, rtol=1e-5)
    assert jnp.array_equal(indices, idx_ref.astype(jnp.int32))
    assert jnp.allclose(vq_loss, loss_ref, atol=1e-5, rtol=1e-4)

    # 2) default large-tile configuration (single 512-row tile)
    q2, i2, l2 = vq_ema_forward(z, codebook)
    jax.block_until_ready((q2, i2, l2))
    assert jnp.allclose(q2, q_ref, atol=1e-5, rtol=1e-5)
    assert jnp.array_equal(i2, idx_ref.astype(jnp.int32))
    assert jnp.allclose(l2, loss_ref, atol=1e-5, rtol=1e-4)

    # 3) ragged case exercising the padded / masked final tile
    z3 = z[:, :15]                                   # N = 480 -> pads to 512
    q3, i3, l3 = vq_ema_forward(z3, codebook, tile_n=256)
    jax.block_until_ready((q3, i3, l3))
    q3_ref, i3_ref, l3_ref = _reference(z3, codebook)
    assert jnp.allclose(q3, q3_ref, atol=1e-5, rtol=1e-5)
    assert jnp.array_equal(i3, i3_ref.astype(jnp.int32))
    assert jnp.allclose(l3, l3_ref, atol=1e-5, rtol=1e-4)

    print("KERNEL_OK")
</pallas_src>

<mosaic_0001>
module attributes {stable_mosaic.version = 11 : i64} {
  func.func @_vq_kernel(%arg0: i32, %arg1: memref<128x32xf32, #tpu.memory_space<vmem>>, %arg2: memref<64x32xf32, #tpu.memory_space<vmem>>, %arg3: memref<1x64xf32, #tpu.memory_space<vmem>>, %arg4: memref<128x32xf32, #tpu.memory_space<vmem>>, %arg5: memref<1x128xi32, #tpu.memory_space<vmem>>, %arg6: memref<1x128xf32, #tpu.memory_space<vmem>>) attributes {dimension_semantics = [#tpu.dimension_semantics<parallel>], iteration_bounds = array<i64: 4>, scalar_prefetch = 0 : i64, scratch_operands = 0 : i64, tpu.core_type = #tpu.core_type<tc>, window_params = [{transform_indices = @transform_0, window_bounds = array<i64: 128, 32>}, {pipeline_mode = #tpu.pipeline_mode<synchronous>, transform_indices = @transform_1, window_bounds = array<i64: 64, 32>}, {pipeline_mode = #tpu.pipeline_mode<synchronous>, transform_indices = @transform_2, window_bounds = array<i64: 1, 64>}, {transform_indices = @transform_3, window_bounds = array<i64: 128, 32>}, {transform_indices = @transform_4, window_bounds = array<i64: 1, 128>}, {transform_indices = @transform_5, window_bounds = array<i64: 1, 128>}]} {
    %c0 = arith.constant 0 : index
    %c0_0 = arith.constant 0 : index
    %0 = vector.load %arg1[%c0, %c0_0] : memref<128x32xf32, #tpu.memory_space<vmem>>, vector<128x32xf32>
    %c0_1 = arith.constant 0 : index
    %c0_2 = arith.constant 0 : index
    %1 = vector.load %arg2[%c0_1, %c0_2] : memref<64x32xf32, #tpu.memory_space<vmem>>, vector<64x32xf32>
    %2 = arith.mulf %0, %0 : vector<128x32xf32>
    %cst = arith.constant dense<0.000000e+00> : vector<128xf32>
    %3 = vector.multi_reduction <add>, %2, %cst [1] : vector<128x32xf32> to vector<128xf32>
    %4 = vector.shape_cast %3 : vector<128xf32> to vector<128x1xf32>
    %5 = tpu.transpose %1, [1, 0] : vector<64x32xf32> -> vector<32x64xf32>
    %cst_3 = arith.constant dense<0.000000e+00> : vector<128x64xf32>
    %6 = tpu.matmul %0, %5, %cst_3 {dimension_numbers = #tpu.dot_dimension_numbers<[1], [0], [0], [1], [0, 0, 1, 1], [], []>} : vector<128x32xf32>, vector<32x64xf32>, vector<128x64xf32> -> vector<128x64xf32>
    %c0_4 = arith.constant 0 : index
    %c0_5 = arith.constant 0 : index
    %7 = vector.load %arg3[%c0_4, %c0_5] : memref<1x64xf32, #tpu.memory_space<vmem>>, vector<1x64xf32>
    %8 = vector.broadcast %4 : vector<128x1xf32> to vector<128x64xf32>
    %9 = vector.broadcast %7 : vector<1x64xf32> to vector<128x64xf32>
    %10 = arith.addf %8, %9 : vector<128x64xf32>
    %cst_6 = arith.constant 2.000000e+00 : f32
    %11 = vector.broadcast %cst_6 : f32 to vector<128x64xf32>
    %12 = arith.mulf %11, %6 : vector<128x64xf32>
    %13 = arith.subf %10, %12 : vector<128x64xf32>
    %14 = tpu.reduce_index %13 {axis = 1 : i32, kind = #tpu.reduction_kind<arg_min>} : vector<128x64xf32> -> vector<128xi32>
    %15 = tpu.iota {dimensions = array<i32: 1>} : vector<128x64xi32>
    %16 = vector.shape_cast %14 : vector<128xi32> to vector<128x1xi32>
    %17 = vector.broadcast %16 : vector<128x1xi32> to vector<128x64xi32>
    %18 = arith.cmpi eq, %15, %17 : vector<128x64xi32>
    %19 = arith.extui %18 : vector<128x64xi1> to vector<128x64xi32>
    %20 = arith.sitofp %19 : vector<128x64xi32> to vector<128x64xf32>
    %cst_7 = arith.constant dense<0.000000e+00> : vector<128x32xf32>
    %21 = tpu.matmul %20, %1, %cst_7 {dimension_numbers = #tpu.dot_dimension_numbers<[1], [0], [0], [1], [0, 0, 1, 1], [], []>} : vector<128x64xf32>, vector<64x32xf32>, vector<128x32xf32> -> vector<128x32xf32>
    %22 = arith.subf %21, %0 : vector<128x32xf32>
    %23 = arith.addf %0, %22 : vector<128x32xf32>
    %c0_8 = arith.constant 0 : index
    %c0_9 = arith.constant 0 : index
    %24 = vector.load %arg4[%c0_8, %c0_9] : memref<128x32xf32, #tpu.memory_space<vmem>>, vector<128x32xf32>
    tpu.vector_store %arg4[%c0_8, %c0_9], %23 {strides = array<i32>} : memref<128x32xf32, #tpu.memory_space<vmem>>, vector<128x32xf32>,
    %25 = vector.shape_cast %14 : vector<128xi32> to vector<1x128xi32>
    %c0_10 = arith.constant 0 : index
    %c0_11 = arith.constant 0 : index
    %26 = vector.load %arg5[%c0_10, %c0_11] : memref<1x128xi32, #tpu.memory_space<vmem>>, vector<1x128xi32>
    tpu.vector_store %arg5[%c0_10, %c0_11], %25 {strides = array<i32>} : memref<1x128xi32, #tpu.memory_space<vmem>>, vector<1x128xi32>,
    %27 = arith.mulf %22, %22 : vector<128x32xf32>
    %28 = vector.shape_cast %27 : vector<128x32xf32> to vector<1x128x32xf32>
    %cst_12 = arith.constant dense<0.000000e+00> : vector<1xf32>
    %29 = vector.multi_reduction <add>, %28, %cst_12 [1, 2] : vector<1x128x32xf32> to vector<1xf32>
    %30 = vector.shape_cast %29 : vector<1xf32> to vector<1x1x1xf32>
    %31 = vector.extract %30[0, 0, 0] : f32 from vector<1x1x1xf32>
    %32 = vector.broadcast %31 : f32 to vector<1x128xf32>
    %c0_13 = arith.constant 0 : index
    %c0_14 = arith.constant 0 : index
    %33 = vector.load %arg6[%c0_13, %c0_14] : memref<1x128xf32, #tpu.memory_space<vmem>>, vector<1x128xf32>
    tpu.vector_store %arg6[%c0_13, %c0_14], %32 {strides = array<i32>} : memref<1x128xf32, #tpu.memory_space<vmem>>, vector<1x128xf32>,
    return
  }
  func.func @transform_0(%arg0: i32) -> (i32, i32) {
    %c0_i32 = arith.constant 0 : i32
    %c0_i32_0 = arith.constant 0 : i32
    return %arg0, %c0_i32 : i32, i32
  }
  func.func @transform_1(%arg0: i32) -> (i32, i32) {
    %c0_i32 = arith.constant 0 : i32
    %c0_i32_0 = arith.constant 0 : i32
    %c0_i32_1 = arith.constant 0 : i32
    return %c0_i32, %c0_i32_0 : i32, i32
  }
  func.func @transform_2(%arg0: i32) -> (i32, i32) {
    %c0_i32 = arith.constant 0 : i32
    %c0_i32_0 = arith.constant 0 : i32
    %c0_i32_1 = arith.constant 0 : i32
    return %c0_i32, %c0_i32_0 : i32, i32
  }
  func.func @transform_3(%arg0: i32) -> (i32, i32) {
    %c0_i32 = arith.constant 0 : i32
    %c0_i32_0 = arith.constant 0 : i32
    return %arg0, %c0_i32 : i32, i32
  }
  func.func @transform_4(%arg0: i32) -> (i32, i32) {
    %c0_i32 = arith.constant 0 : i32
    %c0_i32_0 = arith.constant 0 : i32
    return %c0_i32, %arg0 : i32, i32
  }
  func.func @transform_5(%arg0: i32) -> (i32, i32) {
    %c0_i32 = arith.constant 0 : i32
    %c0_i32_0 = arith.constant 0 : i32
    return %c0_i32, %arg0 : i32, i32
  }
}

</mosaic_0001>

<llo_original>
// kernel: tpu_custom_call.1
$region0: #{tpu_custom_call.1}
  #allocation0 [shape = 'u32[]', space=smem, size = 0x4, offset = 0x4, fixed_abs, tag = 'smem constant byte address 0x4 - core index']
  #allocation1 [shape = 'u32[144,128]{1,0:T(1,128)}', space=vmem, size = 0x12000, scoped, tag = 'internal scratch']
  %s0 = inlined_call_operand.vmem [shape: f32[512,32], index: 0, kind: input, shape index: {}]
  %s1 = inlined_call_operand.vmem [shape: f32[64,32], index: 1, kind: input, shape index: {}]
  %s2 = inlined_call_operand.vmem [shape: f32[1,64], index: 2, kind: input, shape index: {}]
  %s3 = inlined_call_operand.vmem [shape: f32[512,32], index: 3, kind: output, shape index: {0}]
  %s4 = inlined_call_operand.hbm [shape: s32[1,512], index: 4, kind: output, shape index: {1}]
  %s5 = inlined_call_operand.hbm [shape: f32[1,512], index: 5, kind: output, shape index: {2}]
  %6 = xla_tuple %s3, %s4, %s5
  %s7 = sld [smem:[#allocation0]]
  $region61: #{tpu_custom_call.1} parent=0
    _
  %s9 = ssub.s32 1, %s7
  %s10 = scalar_select 0, %s9, %s7
  $region1: #{tpu_custom_call.1} parent=0
    #allocation2 [shape = 'u8[1024]{0}', space=vmem, size = 0x400, scoped, tag = 'output window, operand 1']
    #allocation3 [shape = 's32[2]{0}', space=sflag, size = 0x8, scoped, tag = 'scoped memory for tpu_custom_call.1']
    #allocation4 [shape = 'u8[1024]{0}', space=vmem, size = 0x400, scoped, tag = 'output window, operand 2']
    #allocation5 [shape = 's32[2]{0}', space=sflag, size = 0x8, scoped, tag = 'scoped memory for tpu_custom_call.1']
    %11 = vsyncpa [#allocation3], 0
    %s12 = scalar_lea.sflag [#allocation3], 1
    %13 = vsyncpa %s12, 0
    %14 = vsyncpa [#allocation5], 0
    %s15 = scalar_lea.sflag [#allocation5], 1
    %16 = vsyncpa %s15, 0
    loop: start=0, step=1, limit=6
    $region2: #{tpu_custom_call.1} parent=1 // loop_pre_header
      _
    $region3: #{tpu_custom_call.1} parent=1 // loop_header
      %s18 = sphi 0, %s22
      %p19 = scmp.ge.s32.totalorder %s18, 6
      %s28 = sphi 0, %s30
      %s31 = sphi 0, %s28
      %s32 = sphi 0, %s31
      %s48 = sphi 0, %s32
      %s52 = sphi 0, %s52
      %s54 = sphi 0, %s52
      %s55 = sphi 0, %s54
      %s69 = sphi 0, %s55
      %s73 = sphi 0, %s73
      %s75 = sphi 0, %s73
      %s76 = sphi 0, %s75
      %s90 = sphi 0, %s76
      %s96 = sphi 0, %s98
      %s99 = sphi 0, %s96
      %s100 = sphi 0, %s99
      %s116 = sphi 0, %s100
      %s122 = sphi 0, %s124
      %s125 = sphi 0, %s122
      %s126 = sphi 0, %s125
      %s142 = sphi 0, %s126
      %s148 = sphi 0, %s150
      %s151 = sphi 0, %s148
      %s152 = sphi 0, %s151
      %s168 = sphi 0, %s152
    $region4: #{tpu_custom_call.1} parent=1 // loop_header_branch
      %21 = sbr.rel (%p19) target = $region8
    $region5: #{tpu_custom_call.1} parent=1 // loop_body
      %s23 = ssub.s32 %s18, 1
      %s24 = ssub.s32 %s18, 2
      %s25 = sadd.s32 %s18, 1
      %s26 = ssub.s32 %s18, %s25
      %p27 = scmp.eq.s32.totalorder %s26, 0
      %s29 = sadd.s32 %s28, 1
      %s30 = scalar_select %p27, %s28, %s29
      %p33 = pneg %p27
      %p34 = scmp.eq.s32.totalorder %s18, 3
      %p35 = por %p33, %p34
      %p36 = scmp.ne.s32.totalorder %s28, %s31
      %p37 = scmp.eq.s32.totalorder %s18, 0
      %p38 = por %p36, %p37
      %p39 = scmp.ne.s32.totalorder %s28, %s31
      %p40 = scmp.eq.s32.totalorder %s23, 3
      %p41 = por %p39, %p40
      %p42 = scmp.ne.s32.totalorder %s31, %s32
      %p43 = scmp.eq.s32.totalorder %s23, 0
      %p44 = por %p42, %p43
      %p45 = scmp.ne.s32.totalorder %s31, %s32
      %p46 = scmp.eq.s32.totalorder %s24, 3
      %p47 = por %p45, %p46
      %p49 = scmp.ne.s32.totalorder %s32, %s48
      %p50 = scmp.eq.s32.totalorder %s24, 0
      %p51 = por %p49, %p50
      %s53 = sadd.s32 %s52, 1
      %p56 = scmp.eq.s32.totalorder %s18, 3
      %p57 = scmp.ne.s32.totalorder %s52, %s54
      %p58 = scmp.eq.s32.totalorder %s18, 0
      %p59 = por %p57, %p58
      %p60 = scmp.ne.s32.totalorder %s52, %s54
      %p61 = scmp.eq.s32.totalorder %s23, 3
      %p62 = por %p60, %p61
      %p63 = scmp.ne.s32.totalorder %s54, %s55
      %p64 = scmp.eq.s32.totalorder %s23, 0
      %p65 = por %p63, %p64
      %p66 = scmp.ne.s32.totalorder %s54, %s55
      %p67 = scmp.eq.s32.totalorder %s24, 3
      %p68 = por %p66, %p67
      %p70 = scmp.ne.s32.totalorder %s55, %s69
      %p71 = scmp.eq.s32.totalorder %s24, 0
      %p72 = por %p70, %p71
      %s74 = sadd.s32 %s73, 1
      %p77 = scmp.eq.s32.totalorder %s18, 3
      %p78 = scmp.ne.s32.totalorder %s73, %s75
      %p79 = scmp.eq.s32.totalorder %s18, 0
      %p80 = por %p78, %p79
      %p81 = scmp.ne.s32.totalorder %s73, %s75
      %p82 = scmp.eq.s32.totalorder %s23, 3
      %p83 = por %p81, %p82
      %p84 = scmp.ne.s32.totalorder %s75, %s76
      %p85 = scmp.eq.s32.totalorder %s23, 0
      %p86 = por %p84, %p85
      %p87 = scmp.ne.s32.totalorder %s75, %s76
      %p88 = scmp.eq.s32.totalorder %s24, 3
      %p89 = por %p87, %p88
      %p91 = scmp.ne.s32.totalorder %s76, %s90
      %p92 = scmp.eq.s32.totalorder %s24, 0
      %p93 = por %p91, %p92
      %s94 = ssub.s32 %s18, %s25
      %p95 = scmp.eq.s32.totalorder %s94, 0
      %s97 = sadd.s32 %s96, 1
      %s98 = scalar_select %p95, %s96, %s97
      %p101 = pneg %p95
      %p102 = scmp.eq.s32.totalorder %s18, 3
      %p103 = por %p101, %p102
      %p104 = scmp.ne.s32.totalorder %s96, %s99
      %p105 = scmp.eq.s32.totalorder %s18, 0
      %p106 = por %p104, %p105
      %p107 = scmp.ne.s32.totalorder %s96, %s99
      %p108 = scmp.eq.s32.totalorder %s23, 3
      %p109 = por %p107, %p108
      %p110 = scmp.ne.s32.totalorder %s99, %s100
      %p111 = scmp.eq.s32.totalorder %s23, 0
      %p112 = por %p110, %p111
      %p113 = scmp.ne.s32.totalorder %s99, %s100
      %p114 = scmp.eq.s32.totalorder %s24, 3
      %p115 = por %p113, %p114
      %p117 = scmp.ne.s32.totalorder %s100, %s116
      %p118 = scmp.eq.s32.totalorder %s24, 0
      %p119 = por %p117, %p118
      %s120 = ssub.s32 %s18, %s25
      %p121 = scmp.eq.s32.totalorder %s120, 0
      %s123 = sadd.s32 %s122, 1
      %s124 = scalar_select %p121, %s122, %s123
      %p127 = pneg %p121
      %p128 = scmp.eq.s32.totalorder %s18, 3
      %p129 = por %p127, %p128
      %p130 = scmp.ne.s32.totalorder %s122, %s125
      %p131 = scmp.eq.s32.totalorder %s18, 0
      %p132 = por %p130, %p131
      %p133 = scmp.ne.s32.totalorder %s122, %s125
      %p134 = scmp.eq.s32.totalorder %s23, 3
      %p135 = por %p133, %p134
      %p136 = scmp.ne.s32.totalorder %s125, %s126
      %p137 = scmp.eq.s32.totalorder %s23, 0
      %p138 = por %p136, %p137
      %p139 = scmp.ne.s32.totalorder %s125, %s126
      %p140 = scmp.eq.s32.totalorder %s24, 3
      %p141 = por %p139, %p140
      %p143 = scmp.ne.s32.totalorder %s126, %s142
      %p144 = scmp.eq.s32.totalorder %s24, 0
      %p145 = por %p143, %p144
      %s146 = ssub.s32 %s18, %s25
      %p147 = scmp.eq.s32.totalorder %s146, 0
      %s149 = sadd.s32 %s148, 1
      %s150 = scalar_select %p147, %s148, %s149
      %p153 = pneg %p147
      %p154 = scmp.eq.s32.totalorder %s18, 3
      %p155 = por %p153, %p154
      %p156 = scmp.ne.s32.totalorder %s148, %s151
      %p157 = scmp.eq.s32.totalorder %s18, 0
      %p158 = por %p156, %p157
      %p159 = scmp.ne.s32.totalorder %s148, %s151
      %p160 = scmp.eq.s32.totalorder %s23, 3
      %p161 = por %p159, %p160
      %p162 = scmp.ne.s32.totalorder %s151, %s152
      %p163 = scmp.eq.s32.totalorder %s23, 0
      %p164 = por %p162, %p163
      %p165 = scmp.ne.s32.totalorder %s151, %s152
      %p166 = scmp.eq.s32.totalorder %s24, 3
      %p167 = por %p165, %p166
      %p169 = scmp.ne.s32.totalorder %s152, %s168
      %p170 = scmp.eq.s32.totalorder %s24, 0
      %p171 = por %p169, %p170
      %p172 = scmp.le.s32.totalorder 1, %s18
      %p173 = scmp.lt.s32.totalorder %s18, 5
      %p174 = pnand %p172, %p173
      %p175 = pneg %p174
      // Predicated region
      $region9: #{tpu_custom_call.1} parent=5 // pred_check
        _
      $region10: #{tpu_custom_call.1} parent=5 // pred_check_branch
        %177 = sbr.rel (%p174) target = $region12
      $region11: #{tpu_custom_call.1} parent=5 // pred_region
        %s178 = ssub.s32 %s18, 1
        // Predicated region
        $region13: #{tpu_custom_call.1} parent=11 // pred_check
          %p179 = pneg %p65
        $region14: #{tpu_custom_call.1} parent=11 // pred_check_branch
          %181 = sbr.rel (%p179) target = $region16
        $region15: #{tpu_custom_call.1} parent=11 // pred_region
          _
        $region16: #{tpu_custom_call.1} parent=11 // pred_fallthru
          _
        // Predicated region
        $region17: #{tpu_custom_call.1} parent=11 // pred_check
          %p182 = pneg %p86
        $region18: #{tpu_custom_call.1} parent=11 // pred_check_branch
          %184 = sbr.rel (%p182) target = $region20
        $region19: #{tpu_custom_call.1} parent=11 // pred_region
          _
        $region20: #{tpu_custom_call.1} parent=11 // pred_fallthru
          _
      $region12: #{tpu_custom_call.1} parent=5 // pred_fallthru
        _
      %p185 = scmp.lt.s32.totalorder %s18, 4
      // Predicated region
      $region21: #{tpu_custom_call.1} parent=5 // pred_check
        %p186 = pneg %p185
      $region22: #{tpu_custom_call.1} parent=5 // pred_check_branch
        %188 = sbr.rel (%p186) target = $region24
      $region23: #{tpu_custom_call.1} parent=5 // pred_region
        // Predicated region
        $region25: #{tpu_custom_call.1} parent=23 // pred_check
          %p189 = pneg %p38
        $region26: #{tpu_custom_call.1} parent=23 // pred_check_branch
          %191 = sbr.rel (%p189) target = $region28
        $region27: #{tpu_custom_call.1} parent=23 // pred_region
          %s192 = smul.u32 16, %s18
          %p193 = scmp.lt.s32.totalorder %s192, 63
          %s194 = scalar_select %p193, %s192, 63
          %s195 = smul.addr %s194, 8
          %s196 = scalar_lea.vmem %s0, %s195
          %s197 = smul.u32 16, %s18
        $region28: #{tpu_custom_call.1} parent=23 // pred_fallthru
          _
      $region24: #{tpu_custom_call.1} parent=5 // pred_fallthru
        _
      %p198 = scmp.le.s32.totalorder 1, %s18
      %p199 = scmp.lt.s32.totalorder %s18, 5
      %p200 = pnand %p198, %p199
      %p201 = pneg %p200
      // Predicated region
      $region29: #{tpu_custom_call.1} parent=5 // pred_check
        _
      $region30: #{tpu_custom_call.1} parent=5 // pred_check_branch
        %203 = sbr.rel (%p200) target = $region32
      $region31: #{tpu_custom_call.1} parent=5 // pred_region
        %s204 = ssub.s32 %s18, 1
        %s205 = smul.u32 16, %s23
        %p206 = scmp.lt.s32.totalorder %s205, 63
        %s207 = scalar_select %p206, %s205, 63
        %s208 = smul.addr %s207, 8
        %s209 = scalar_lea.vmem %s0, %s208
        %p210 = pneg %p44
        %p211 = pneg %p41
        %p212 = pneg %p65
        %p213 = pneg %p62
        %p214 = pneg %p86
        %p215 = pneg %p83
        %p216 = pneg %p112
        %p217 = pneg %p109
        %s218 = smul.u32 16, %s23
        %p219 = scmp.lt.s32.totalorder %s218, 63
        %s220 = scalar_select %p219, %s218, 63
        %s221 = smul.addr %s220, 8
        %s222 = scalar_lea.vmem %s3, %s221
        %p223 = pneg %p138
        %p224 = pneg %p135
        %s225 = sand.u32 %s125, 1
        %s226 = scalar_lea.sflag [#allocation3], %s225
        %s227 = sand.u32 %s125, 1
        %s228 = scalar_lea.vmem [#allocation2], %s227
        %p229 = pneg %p164
        %p230 = pneg %p161
        %s231 = sand.u32 %s151, 1
        %s232 = scalar_lea.sflag [#allocation5], %s231
        %s233 = sand.u32 %s151, 1
        %s234 = scalar_lea.vmem [#allocation4], %s233
        %s235 = smul.u32 16, %s23
        %p236 = scmp.lt.s32.totalorder %s235, 63
        %s237 = scalar_select %p236, %s235, 63
        %s238 = smul.addr %s237, 8
        %s239 = scalar_lea.vmem %s0, %s238
        %s240 = smul.u32 16, %s23
        %s241 = smul.u32 16, %s23
        %p242 = scmp.lt.s32.totalorder %s241, 63
        %s243 = scalar_select %p242, %s241, 63
        %s244 = smul.addr %s243, 8
        %s245 = scalar_lea.vmem %s3, %s244
        %s246 = smul.u32 16, %s23
        %v247 = vld [vmem:[%s239] sm:$0xff]
        %v248 = vld [vmem:[%s239 + $0x8] sm:$0xff]
        %v249 = vld [vmem:[%s239 + $0x10] sm:$0xff]
        %v250 = vld [vmem:[%s239 + $0x18] sm:$0xff]
        %v251 = vld [vmem:[%s239 + $0x20] sm:$0xff]
        %v252 = vld [vmem:[%s239 + $0x28] sm:$0xff]
        %v253 = vld [vmem:[%s239 + $0x30] sm:$0xff]
        %v254 = vld [vmem:[%s239 + $0x38] sm:$0xff]
        %v255 = vld [vmem:[%s239 + $0x40] sm:$0xff]
        %v256 = vld [vmem:[%s239 + $0x48] sm:$0xff]
        %v257 = vld [vmem:[%s239 + $0x50] sm:$0xff]
        %v258 = vld [vmem:[%s239 + $0x58] sm:$0xff]
        %v259 = vld [vmem:[%s239 + $0x60] sm:$0xff]
        %v260 = vld [vmem:[%s239 + $0x68] sm:$0xff]
        %v261 = vld [vmem:[%s239 + $0x70] sm:$0xff]
        %v262 = vld [vmem:[%s239 + $0x78] sm:$0xff]
        %v263 = vld [vmem:[%s1] sm:$0xff]
        %v264 = vld [vmem:[%s1 + $0x8] sm:$0xff]
        %v265 = vld [vmem:[%s1 + $0x10] sm:$0xff]
        %v266 = vld [vmem:[%s1 + $0x18] sm:$0xff]
        %v267 = vld [vmem:[%s1 + $0x20] sm:$0xff]
        %v268 = vld [vmem:[%s1 + $0x28] sm:$0xff]
        %v269 = vld [vmem:[%s1 + $0x30] sm:$0xff]
        %v270 = vld [vmem:[%s1 + $0x38] sm:$0xff]
        %v271 = vmul.f32 %v247, %v247
        %v272 = vmul.f32 %v248, %v248
        %v273 = vmul.f32 %v249, %v249
        %v274 = vmul.f32 %v250, %v250
        %v275 = vmul.f32 %v251, %v251
        %v276 = vmul.f32 %v252, %v252
        %v277 = vmul.f32 %v253, %v253
        %v278 = vmul.f32 %v254, %v254
        %v279 = vmul.f32 %v255, %v255
        %v280 = vmul.f32 %v256, %v256
        %v281 = vmul.f32 %v257, %v257
        %v282 = vmul.f32 %v258, %v258
        %v283 = vmul.f32 %v259, %v259
        %v284 = vmul.f32 %v260, %v260
        %v285 = vmul.f32 %v261, %v261
        %v286 = vmul.f32 %v262, %v262
        %vm287 = vcmask 261120
        %v288 = vsel %vm287, %v271, 0.0
        %289 = vadd.xlane.f32.xlu0 %v288
        %v290 = vpop.xlane.xlu0 %289
        %v291 = vsel %vm287, %v272, 0.0
        %292 = vadd.xlane.f32.xlu0 %v291
        %v293 = vpop.xlane.xlu0 %292
        %v294 = vsel %vm287, %v273, 0.0
        %295 = vadd.xlane.f32.xlu0 %v294
        %v296 = vpop.xlane.xlu0 %295
        %v297 = vsel %vm287, %v274, 0.0
        %298 = vadd.xlane.f32.xlu0 %v297
        %v299 = vpop.xlane.xlu0 %298
        %v300 = vsel %vm287, %v275, 0.0
        %301 = vadd.xlane.f32.xlu0 %v300
        %v302 = vpop.xlane.xlu0 %301
        %v303 = vsel %vm287, %v276, 0.0
        %304 = vadd.xlane.f32.xlu0 %v303
        %v305 = vpop.xlane.xlu0 %304
        %v306 = vsel %vm287, %v277, 0.0
        %307 = vadd.xlane.f32.xlu0 %v306
        %v308 = vpop.xlane.xlu0 %307
        %v309 = vsel %vm287, %v278, 0.0
        %310 = vadd.xlane.f32.xlu0 %v309
        %v311 = vpop.xlane.xlu0 %310
        %v312 = vsel %vm287, %v279, 0.0
        %313 = vadd.xlane.f32.xlu0 %v312
        %v314 = vpop.xlane.xlu0 %313
        %v315 = vsel %vm287, %v280, 0.0
        %316 = vadd.xlane.f32.xlu0 %v315
        %v317 = vpop.xlane.xlu0 %316
        %v318 = vsel %vm287, %v281, 0.0
        %319 = vadd.xlane.f32.xlu0 %v318
        %v320 = vpop.xlane.xlu0 %319
        %v321 = vsel %vm287, %v282, 0.0
        %322 = vadd.xlane.f32.xlu0 %v321
        %v323 = vpop.xlane.xlu0 %322
        %v324 = vsel %vm287, %v283, 0.0
        %325 = vadd.xlane.f32.xlu0 %v324
        %v326 = vpop.xlane.xlu0 %325
        %v327 = vsel %vm287, %v284, 0.0
        %328 = vadd.xlane.f32.xlu0 %v327
        %v329 = vpop.xlane.xlu0 %328
        %v330 = vsel %vm287, %v285, 0.0
        %331 = vadd.xlane.f32.xlu0 %v330
        %v332 = vpop.xlane.xlu0 %331
        %v333 = vsel %vm287, %v286, 0.0
        %334 = vadd.xlane.f32.xlu0 %v333
        %v335 = vpop.xlane.xlu0 %334
        %v337 = vsel %vm287, %v247, 0
        %v340 = vsel %vm287, %v248, 0
        %v343 = vsel %vm287, %v249, 0
        %v346 = vsel %vm287, %v250, 0
        %v349 = vsel %vm287, %v251, 0
        %v352 = vsel %vm287, %v252, 0
        %v355 = vsel %vm287, %v253, 0
        %v358 = vsel %vm287, %v254, 0
        %v361 = vsel %vm287, %v255, 0
        %v364 = vsel %vm287, %v256, 0
        %v367 = vsel %vm287, %v257, 0
        %v370 = vsel %vm287, %v258, 0
        %v373 = vsel %vm287, %v259, 0
        %v376 = vsel %vm287, %v260, 0
        %v379 = vsel %vm287, %v261, 0
        %v382 = vsel %vm287, %v262, 0
        %v385 = vsel %vm287, %v263, 0
        %v388 = vsel %vm287, %v264, 0
        %v391 = vsel %vm287, %v265, 0
        %v394 = vsel %vm287, %v266, 0
        %v397 = vsel %vm287, %v267, 0
        %v400 = vsel %vm287, %v268, 0
        %v403 = vsel %vm287, %v269, 0
        %v406 = vsel %vm287, %v270, 0
        %408 = vmatprep.subr.mxu0 0.0
        %409 = vmatpush1.xpose.msra.mxu0 0.0
        %410 = vmatprep.subr.mxu0 0.0
        %411 = vmatpush1.xpose.msra.mxu0 0.0
        %412 = vmatprep.subr.mxu0 0.0
        %413 = vmatpush1.xpose.msra.mxu0 0.0
        %414 = vmatprep.subr.mxu0 0.0
        %415 = vmatpush1.xpose.msra.mxu0 0.0
        %416 = vmatprep.subr.mxu0 0.0
        %417 = vmatpush1.xpose.msra.mxu0 0.0
        %418 = vmatprep.subr.mxu0 0.0
        %419 = vmatpush1.xpose.msra.mxu0 0.0
        %420 = vmatprep.subr.mxu0 0.0
        %421 = vmatpush1.xpose.msra.mxu0 0.0
        %422 = vmatprep.subr.mxu0 0.0
        %423 = vmatpush1.xpose.msra.mxu0 0.0
        %424 = vmatprep.subr.mxu0 0.0
        %425 = vmatpush1.xpose.msra.mxu0 %v406
        %426 = vmatprep.subr.mxu0 0.0
        %427 = vmatpush1.xpose.msra.mxu0 %v403
        %428 = vmatprep.subr.mxu0 0.0
        %429 = vmatpush1.xpose.msra.mxu0 %v400
        %430 = vmatprep.subr.mxu0 0.0
        %431 = vmatpush1.xpose.msra.mxu0 %v397
        %432 = vmatprep.subr.mxu0 0.0
        %433 = vmatpush1.xpose.msra.mxu0 %v394
        %434 = vmatprep.subr.mxu0 0.0
        %435 = vmatpush1.xpose.msra.mxu0 %v391
        %436 = vmatprep.subr.mxu0 0.0
        %437 = vmatpush1.xpose.msra.mxu0 %v388
        %438 = vmatprep.subr.mxu0 0.0
        %439 = vmatpush1.xpose.msra.mxu0 %v385
        %440 = vmatprep.subr.mxu0 0.0
        %441 = vmatpush2.xpose.msra.mxu0 0.0
        %442 = vmatprep.subr.mxu0 0.0
        %443 = vmatpush2.xpose.msra.mxu0 0.0
        %444 = vmatprep.subr.mxu0 0.0
        %445 = vmatpush2.xpose.msra.mxu0 0.0
        %446 = vmatprep.subr.mxu0 0.0
        %447 = vmatpush2.xpose.msra.mxu0 0.0
        %448 = vmatprep.subr.mxu0 0.0
        %449 = vmatpush2.xpose.msra.mxu0 0.0
        %450 = vmatprep.subr.mxu0 0.0
        %451 = vmatpush2.xpose.msra.mxu0 0.0
        %452 = vmatprep.subr.mxu0 0.0
        %453 = vmatpush2.xpose.msra.mxu0 0.0
        %454 = vmatprep.subr.mxu0 0.0
        %455 = vmatpush2.xpose.msra.mxu0 0.0
        %456 = vmatprep.subr.mxu0 0.0
        %457 = vmatpush2.xpose.msra.mxu0 0.0
        %458 = vmatprep.subr.mxu0 0.0
        %459 = vmatpush2.xpose.msra.mxu0 0.0
        %460 = vmatprep.subr.mxu0 0.0
        %461 = vmatpush2.xpose.msra.mxu0 0.0
        %462 = vmatprep.subr.mxu0 0.0
        %463 = vmatpush2.xpose.msra.mxu0 0.0
        %464 = vmatprep.subr.mxu0 0.0
        %465 = vmatpush2.xpose.msra.mxu0 0.0
        %466 = vmatprep.subr.mxu0 0.0
        %467 = vmatpush2.xpose.msra.mxu0 0.0
        %468 = vmatprep.subr.mxu0 0.0
        %469 = vmatpush2.xpose.msra.mxu0 0.0
        %470 = vmatprep.subr.mxu0 0.0
        %471 = vmatpush2.xpose.msra.mxu0 0.0
        %472 = vmatprep.mubr.f32.mxu0 0.0
        %473 = vmatmul.mubr.f32.gmra.mxu0 %v337
        %v474 = vpop.f32.mrf.mxu0
        %v475 = vadd.f32 0.0, %v474
        %v476 = vpop.f32.mrf.mxu0
        %477 = vmatprep.mubr.f32.mxu0 0.0
        %478 = vmatmul.mubr.f32.gmra.mxu0 %v340
        %v479 = vpop.f32.mrf.mxu0
        %v480 = vadd.f32 0.0, %v479
        %v481 = vpop.f32.mrf.mxu0
        %482 = vmatprep.mubr.f32.mxu0 0.0
        %483 = vmatmul.mubr.f32.gmra.mxu0 %v343
        %v484 = vpop.f32.mrf.mxu0
        %v485 = vadd.f32 0.0, %v484
        %v486 = vpop.f32.mrf.mxu0
        %487 = vmatprep.mubr.f32.mxu0 0.0
        %488 = vmatmul.mubr.f32.gmra.mxu0 %v346
        %v489 = vpop.f32.mrf.mxu0
        %v490 = vadd.f32 0.0, %v489
        %v491 = vpop.f32.mrf.mxu0
        %492 = vmatprep.mubr.f32.mxu0 0.0
        %493 = vmatmul.mubr.f32.gmra.mxu0 %v349
        %v494 = vpop.f32.mrf.mxu0
        %v495 = vadd.f32 0.0, %v494
        %v496 = vpop.f32.mrf.mxu0
        %497 = vmatprep.mubr.f32.mxu0 0.0
        %498 = vmatmul.mubr.f32.gmra.mxu0 %v352
        %v499 = vpop.f32.mrf.mxu0
        %v500 = vadd.f32 0.0, %v499
        %v501 = vpop.f32.mrf.mxu0
        %502 = vmatprep.mubr.f32.mxu0 0.0
        %503 = vmatmul.mubr.f32.gmra.mxu0 %v355
        %v504 = vpop.f32.mrf.mxu0
        %v505 = vadd.f32 0.0, %v504
        %v506 = vpop.f32.mrf.mxu0
        %507 = vmatprep.mubr.f32.mxu0 0.0
        %508 = vmatmul.mubr.f32.gmra.mxu0 %v358
        %v509 = vpop.f32.mrf.mxu0
        %v510 = vadd.f32 0.0, %v509
        %v511 = vpop.f32.mrf.mxu0
        %512 = vmatprep.mubr.f32.mxu0 0.0
        %513 = vmatmul.mubr.f32.gmra.mxu0 %v361
        %v514 = vpop.f32.mrf.mxu0
        %v515 = vadd.f32 0.0, %v514
        %v516 = vpop.f32.mrf.mxu0
        %517 = vmatprep.mubr.f32.mxu0 0.0
        %518 = vmatmul.mubr.f32.gmra.mxu0 %v364
        %v519 = vpop.f32.mrf.mxu0
        %v520 = vadd.f32 0.0, %v519
        %v521 = vpop.f32.mrf.mxu0
        %522 = vmatprep.mubr.f32.mxu0 0.0
        %523 = vmatmul.mubr.f32.gmra.mxu0 %v367
        %v524 = vpop.f32.mrf.mxu0
        %v525 = vadd.f32 0.0, %v524
        %v526 = vpop.f32.mrf.mxu0
        %527 = vmatprep.mubr.f32.mxu0 0.0
        %528 = vmatmul.mubr.f32.gmra.mxu0 %v370
        %v529 = vpop.f32.mrf.mxu0
        %v530 = vadd.f32 0.0, %v529
        %v531 = vpop.f32.mrf.mxu0
        %532 = vmatprep.mubr.f32.mxu0 0.0
        %533 = vmatmul.mubr.f32.gmra.mxu0 %v373
        %v534 = vpop.f32.mrf.mxu0
        %v535 = vadd.f32 0.0, %v534
        %v536 = vpop.f32.mrf.mxu0
        %537 = vmatprep.mubr.f32.mxu0 0.0
        %538 = vmatmul.mubr.f32.gmra.mxu0 %v376
        %v539 = vpop.f32.mrf.mxu0
        %v540 = vadd.f32 0.0, %v539
        %v541 = vpop.f32.mrf.mxu0
        %542 = vmatprep.mubr.f32.mxu0 0.0
        %543 = vmatmul.mubr.f32.gmra.mxu0 %v379
        %v544 = vpop.f32.mrf.mxu0
        %v545 = vadd.f32 0.0, %v544
        %v546 = vpop.f32.mrf.mxu0
        %547 = vmatprep.mubr.f32.mxu0 0.0
        %548 = vmatmul.mubr.f32.gmra.mxu0 %v382
        %v549 = vpop.f32.mrf.mxu0
        %v550 = vadd.f32 0.0, %v549
        %v551 = vpop.f32.mrf.mxu0
        %552 = vdwg.mxu0
        %v553 = vld [vmem:[%s2] sm:$0x1]
        %v555 = vlaneseq
        %v556 = vshrl.u32 %v555, 7
        %v557 = vsub.s32 0, %v556
        %v558 = vrot.slane %v553, %v557
        %v560 = vadd.f32 %v290, %v558
        %v561 = vadd.f32 %v293, %v558
        %v562 = vadd.f32 %v296, %v558
        %v563 = vadd.f32 %v299, %v558
        %v564 = vadd.f32 %v302, %v558
        %v565 = vadd.f32 %v305, %v558
        %v566 = vadd.f32 %v308, %v558
        %v567 = vadd.f32 %v311, %v558
        %v568 = vadd.f32 %v314, %v558
        %v569 = vadd.f32 %v317, %v558
        %v570 = vadd.f32 %v320, %v558
        %v571 = vadd.f32 %v323, %v558
        %v572 = vadd.f32 %v326, %v558
        %v573 = vadd.f32 %v329, %v558
        %v574 = vadd.f32 %v332, %v558
        %v575 = vadd.f32 %v335, %v558
        %v576 = vmul.f32 %v475, 2.0
        %v577 = vmul.f32 %v480, 2.0
        %v578 = vmul.f32 %v485, 2.0
        %v579 = vmul.f32 %v490, 2.0
        %v580 = vmul.f32 %v495, 2.0
        %v581 = vmul.f32 %v500, 2.0
        %v582 = vmul.f32 %v505, 2.0
        %v583 = vmul.f32 %v510, 2.0
        %v584 = vmul.f32 %v515, 2.0
        %v585 = vmul.f32 %v520, 2.0
        %v586 = vmul.f32 %v525, 2.0
        %v587 = vmul.f32 %v530, 2.0
        %v588 = vmul.f32 %v535, 2.0
        %v589 = vmul.f32 %v540, 2.0
        %v590 = vmul.f32 %v545, 2.0
        %v591 = vmul.f32 %v550, 2.0
        %v592 = vsub.f32 %v560, %v576
        %v593 = vsub.f32 %v561, %v577
        %v594 = vsub.f32 %v562, %v578
        %v595 = vsub.f32 %v563, %v579
        %v596 = vsub.f32 %v564, %v580
        %v597 = vsub.f32 %v565, %v581
        %v598 = vsub.f32 %v566, %v582
        %v599 = vsub.f32 %v567, %v583
        %v600 = vsub.f32 %v568, %v584
        %v601 = vsub.f32 %v569, %v585
        %v602 = vsub.f32 %v570, %v586
        %v603 = vsub.f32 %v571, %v587
        %v604 = vsub.f32 %v572, %v588
        %v605 = vsub.f32 %v573, %v589
        %v606 = vsub.f32 %v574, %v590
        %v607 = vsub.f32 %v575, %v591
        %vm608 = vcmask 523264
        %v609 = vsel %vm608, %v592, inf
        %610 = vmin.index.xlane.f32.xlu0 %v609
        %v611 = vpop.xlane.xlu0 %610
        %v612 = vsel %vm608, %v593, inf
        %613 = vmin.index.xlane.f32.xlu0 %v612
        %v614 = vpop.xlane.xlu0 %613
        %v615 = vsel %vm608, %v594, inf
        %616 = vmin.index.xlane.f32.xlu0 %v615
        %v617 = vpop.xlane.xlu0 %616
        %v618 = vsel %vm608, %v595, inf
        %619 = vmin.index.xlane.f32.xlu0 %v618
        %v620 = vpop.xlane.xlu0 %619
        %v621 = vsel %vm608, %v596, inf
        %622 = vmin.index.xlane.f32.xlu0 %v621
        %v623 = vpop.xlane.xlu0 %622
        %v624 = vsel %vm608, %v597, inf
        %625 = vmin.index.xlane.f32.xlu0 %v624
        %v626 = vpop.xlane.xlu0 %625
        %v627 = vsel %vm608, %v598, inf
        %628 = vmin.index.xlane.f32.xlu0 %v627
        %v629 = vpop.xlane.xlu0 %628
        %v630 = vsel %vm608, %v599, inf
        %631 = vmin.index.xlane.f32.xlu0 %v630
        %v632 = vpop.xlane.xlu0 %631
        %v633 = vsel %vm608, %v600, inf
        %634 = vmin.index.xlane.f32.xlu0 %v633
        %v635 = vpop.xlane.xlu0 %634
        %v636 = vsel %vm608, %v601, inf
        %637 = vmin.index.xlane.f32.xlu0 %v636
        %v638 = vpop.xlane.xlu0 %637
        %v639 = vsel %vm608, %v602, inf
        %640 = vmin.index.xlane.f32.xlu0 %v639
        %v641 = vpop.xlane.xlu0 %640
        %v642 = vsel %vm608, %v603, inf
        %643 = vmin.index.xlane.f32.xlu0 %v642
        %v644 = vpop.xlane.xlu0 %643
        %v645 = vsel %vm608, %v604, inf
        %646 = vmin.index.xlane.f32.xlu0 %v645
        %v647 = vpop.xlane.xlu0 %646
        %v648 = vsel %vm608, %v605, inf
        %649 = vmin.index.xlane.f32.xlu0 %v648
        %v650 = vpop.xlane.xlu0 %649
        %v651 = vsel %vm608, %v606, inf
        %652 = vmin.index.xlane.f32.xlu0 %v651
        %v653 = vpop.xlane.xlu0 %652
        %v654 = vsel %vm608, %v607, inf
        %655 = vmin.index.xlane.f32.xlu0 %v654
        %v656 = vpop.xlane.xlu0 %655
        %v657 = vlaneseq
        %v658 = vand.u32 %v657, 127
        %vm659 = vcmp.eq.s32.totalorder %v658, %v611
        %vm660 = vcmp.eq.s32.totalorder %v658, %v614
        %vm661 = vcmp.eq.s32.totalorder %v658, %v617
        %vm662 = vcmp.eq.s32.totalorder %v658, %v620
        %vm663 = vcmp.eq.s32.totalorder %v658, %v623
        %vm664 = vcmp.eq.s32.totalorder %v658, %v626
        %vm665 = vcmp.eq.s32.totalorder %v658, %v629
        %vm666 = vcmp.eq.s32.totalorder %v658, %v632
        %vm667 = vcmp.eq.s32.totalorder %v658, %v635
        %vm668 = vcmp.eq.s32.totalorder %v658, %v638
        %vm669 = vcmp.eq.s32.totalorder %v658, %v641
        %vm670 = vcmp.eq.s32.totalorder %v658, %v644
        %vm671 = vcmp.eq.s32.totalorder %v658, %v647
        %vm672 = vcmp.eq.s32.totalorder %v658, %v650
        %vm673 = vcmp.eq.s32.totalorder %v658, %v653
        %vm674 = vcmp.eq.s32.totalorder %v658, %v656
        %v675 = vsel %vm659, 1, 0
        %v676 = vsel %vm660, 1, 0
        %v677 = vsel %vm661, 1, 0
        %v678 = vsel %vm662, 1, 0
        %v679 = vsel %vm663, 1, 0
        %v680 = vsel %vm664, 1, 0
        %v681 = vsel %vm665, 1, 0
        %v682 = vsel %vm666, 1, 0
        %v683 = vsel %vm667, 1, 0
        %v684 = vsel %vm668, 1, 0
        %v685 = vsel %vm669, 1, 0
        %v686 = vsel %vm670, 1, 0
        %v687 = vsel %vm671, 1, 0
        %v688 = vsel %vm672, 1, 0
        %v689 = vsel %vm673, 1, 0
        %v690 = vsel %vm674, 1, 0
        %v691 = vcvt.s32.f32 %v675
        %v692 = vcvt.s32.f32 %v676
        %v693 = vcvt.s32.f32 %v677
        %v694 = vcvt.s32.f32 %v678
        %v695 = vcvt.s32.f32 %v679
        %v696 = vcvt.s32.f32 %v680
        %v697 = vcvt.s32.f32 %v681
        %v698 = vcvt.s32.f32 %v682
        %v699 = vcvt.s32.f32 %v683
        %v700 = vcvt.s32.f32 %v684
        %v701 = vcvt.s32.f32 %v685
        %v702 = vcvt.s32.f32 %v686
        %v703 = vcvt.s32.f32 %v687
        %v704 = vcvt.s32.f32 %v688
        %v705 = vcvt.s32.f32 %v689
        %v706 = vcvt.s32.f32 %v690
        %v708 = vsel %vm608, %v691, 0
        %v711 = vsel %vm608, %v692, 0
        %v714 = vsel %vm608, %v693, 0
        %v717 = vsel %vm608, %v694, 0
        %v720 = vsel %vm608, %v695, 0
        %v723 = vsel %vm608, %v696, 0
        %v726 = vsel %vm608, %v697, 0
        %v729 = vsel %vm608, %v698, 0
        %v732 = vsel %vm608, %v699, 0
        %v735 = vsel %vm608, %v700, 0
        %v738 = vsel %vm608, %v701, 0
        %v741 = vsel %vm608, %v702, 0
        %v744 = vsel %vm608, %v703, 0
        %v747 = vsel %vm608, %v704, 0
        %v750 = vsel %vm608, %v705, 0
        %v753 = vsel %vm608, %v706, 0
        %755 = vmatprep.subr.mxu0 0.0
        %756 = vmatpush1.msra.mxu0 0.0
        %757 = vmatprep.subr.mxu0 0.0
        %758 = vmatpush1.msra.mxu0 0.0
        %759 = vmatprep.subr.mxu0 0.0
        %760 = vmatpush1.msra.mxu0 0.0
        %761 = vmatprep.subr.mxu0 0.0
        %762 = vmatpush1.msra.mxu0 0.0
        %763 = vmatprep.subr.mxu0 0.0
        %764 = vmatpush1.msra.mxu0 0.0
        %765 = vmatprep.subr.mxu0 0.0
        %766 = vmatpush1.msra.mxu0 0.0
        %767 = vmatprep.subr.mxu0 0.0
        %768 = vmatpush1.msra.mxu0 0.0
        %769 = vmatprep.subr.mxu0 0.0
        %770 = vmatpush1.msra.mxu0 0.0
        %771 = vmatprep.subr.mxu0 0.0
        %772 = vmatpush1.msra.mxu0 %v270
        %773 = vmatprep.subr.mxu0 0.0
        %774 = vmatpush1.msra.mxu0 %v269
        %775 = vmatprep.subr.mxu0 0.0
        %776 = vmatpush1.msra.mxu0 %v268
        %777 = vmatprep.subr.mxu0 0.0
        %778 = vmatpush1.msra.mxu0 %v267
        %779 = vmatprep.subr.mxu0 0.0
        %780 = vmatpush1.msra.mxu0 %v266
        %781 = vmatprep.subr.mxu0 0.0
        %782 = vmatpush1.msra.mxu0 %v265
        %783 = vmatprep.subr.mxu0 0.0
        %784 = vmatpush1.msra.mxu0 %v264
        %785 = vmatprep.subr.mxu0 0.0
        %786 = vmatpush1.msra.mxu0 %v263
        %787 = vmatprep.subr.mxu0 0.0
        %788 = vmatpush2.msra.mxu0 0.0
        %789 = vmatprep.subr.mxu0 0.0
        %790 = vmatpush2.msra.mxu0 0.0
        %791 = vmatprep.subr.mxu0 0.0
        %792 = vmatpush2.msra.mxu0 0.0
        %793 = vmatprep.subr.mxu0 0.0
        %794 = vmatpush2.msra.mxu0 0.0
        %795 = vmatprep.subr.mxu0 0.0
        %796 = vmatpush2.msra.mxu0 0.0
        %797 = vmatprep.subr.mxu0 0.0
        %798 = vmatpush2.msra.mxu0 0.0
        %799 = vmatprep.subr.mxu0 0.0
        %800 = vmatpush2.msra.mxu0 0.0
        %801 = vmatprep.subr.mxu0 0.0
        %802 = vmatpush2.msra.mxu0 0.0
        %803 = vmatprep.subr.mxu0 0.0
        %804 = vmatpush2.msra.mxu0 0.0
        %805 = vmatprep.subr.mxu0 0.0
        %806 = vmatpush2.msra.mxu0 0.0
        %807 = vmatprep.subr.mxu0 0.0
        %808 = vmatpush2.msra.mxu0 0.0
        %809 = vmatprep.subr.mxu0 0.0
        %810 = vmatpush2.msra.mxu0 0.0
        %811 = vmatprep.subr.mxu0 0.0
        %812 = vmatpush2.msra.mxu0 0.0
        %813 = vmatprep.subr.mxu0 0.0
        %814 = vmatpush2.msra.mxu0 0.0
        %815 = vmatprep.subr.mxu0 0.0
        %816 = vmatpush2.msra.mxu0 0.0
        %817 = vmatprep.subr.mxu0 0.0
        %818 = vmatpush2.msra.mxu0 0.0
        %819 = vmatprep.mubr.f32.mxu0 0.0
        %820 = vmatmul.mubr.f32.gmra.mxu0 %v708
        %v821 = vpop.f32.mrf.mxu0
        %v822 = vadd.f32 0.0, %v821
        %v823 = vpop.f32.mrf.mxu0
        %824 = vmatprep.mubr.f32.mxu0 0.0
        %825 = vmatmul.mubr.f32.gmra.mxu0 %v711
        %v826 = vpop.f32.mrf.mxu0
        %v827 = vadd.f32 0.0, %v826
        %v828 = vpop.f32.mrf.mxu0
        %829 = vmatprep.mubr.f32.mxu0 0.0
        %830 = vmatmul.mubr.f32.gmra.mxu0 %v714
        %v831 = vpop.f32.mrf.mxu0
        %v832 = vadd.f32 0.0, %v831
        %v833 = vpop.f32.mrf.mxu0
        %834 = vmatprep.mubr.f32.mxu0 0.0
        %835 = vmatmul.mubr.f32.gmra.mxu0 %v717
        %v836 = vpop.f32.mrf.mxu0
        %v837 = vadd.f32 0.0, %v836
        %v838 = vpop.f32.mrf.mxu0
        %839 = vmatprep.mubr.f32.mxu0 0.0
        %840 = vmatmul.mubr.f32.gmra.mxu0 %v720
        %v841 = vpop.f32.mrf.mxu0
        %v842 = vadd.f32 0.0, %v841
        %v843 = vpop.f32.mrf.mxu0
        %844 = vmatprep.mubr.f32.mxu0 0.0
        %845 = vmatmul.mubr.f32.gmra.mxu0 %v723
        %v846 = vpop.f32.mrf.mxu0
        %v847 = vadd.f32 0.0, %v846
        %v848 = vpop.f32.mrf.mxu0
        %849 = vmatprep.mubr.f32.mxu0 0.0
        %850 = vmatmul.mubr.f32.gmra.mxu0 %v726
        %v851 = vpop.f32.mrf.mxu0
        %v852 = vadd.f32 0.0, %v851
        %v853 = vpop.f32.mrf.mxu0
        %854 = vmatprep.mubr.f32.mxu0 0.0
        %855 = vmatmul.mubr.f32.gmra.mxu0 %v729
        %v856 = vpop.f32.mrf.mxu0
        %v857 = vadd.f32 0.0, %v856
        %v858 = vpop.f32.mrf.mxu0
        %859 = vmatprep.mubr.f32.mxu0 0.0
        %860 = vmatmul.mubr.f32.gmra.mxu0 %v732
        %v861 = vpop.f32.mrf.mxu0
        %v862 = vadd.f32 0.0, %v861
        %v863 = vpop.f32.mrf.mxu0
        %864 = vmatprep.mubr.f32.mxu0 0.0
        %865 = vmatmul.mubr.f32.gmra.mxu0 %v735
        %v866 = vpop.f32.mrf.mxu0
        %v867 = vadd.f32 0.0, %v866
        %v868 = vpop.f32.mrf.mxu0
        %869 = vmatprep.mubr.f32.mxu0 0.0
        %870 = vmatmul.mubr.f32.gmra.mxu0 %v738
        %v871 = vpop.f32.mrf.mxu0
        %v872 = vadd.f32 0.0, %v871
        %v873 = vpop.f32.mrf.mxu0
        %874 = vmatprep.mubr.f32.mxu0 0.0
        %875 = vmatmul.mubr.f32.gmra.mxu0 %v741
        %v876 = vpop.f32.mrf.mxu0
        %v877 = vadd.f32 0.0, %v876
        %v878 = vpop.f32.mrf.mxu0
        %879 = vmatprep.mubr.f32.mxu0 0.0
        %880 = vmatmul.mubr.f32.gmra.mxu0 %v744
        %v881 = vpop.f32.mrf.mxu0
        %v882 = vadd.f32 0.0, %v881
        %v883 = vpop.f32.mrf.mxu0
        %884 = vmatprep.mubr.f32.mxu0 0.0
        %885 = vmatmul.mubr.f32.gmra.mxu0 %v747
        %v886 = vpop.f32.mrf.mxu0
        %v887 = vadd.f32 0.0, %v886
        %v888 = vpop.f32.mrf.mxu0
        %889 = vmatprep.mubr.f32.mxu0 0.0
        %890 = vmatmul.mubr.f32.gmra.mxu0 %v750
        %v891 = vpop.f32.mrf.mxu0
        %v892 = vadd.f32 0.0, %v891
        %v893 = vpop.f32.mrf.mxu0
        %894 = vmatprep.mubr.f32.mxu0 0.0
        %895 = vmatmul.mubr.f32.gmra.mxu0 %v753
        %v896 = vpop.f32.mrf.mxu0
        %v897 = vadd.f32 0.0, %v896
        %v898 = vpop.f32.mrf.mxu0
        %899 = vdwg.mxu0
        %v900 = vsub.f32 %v822, %v247
        %v901 = vsub.f32 %v827, %v248
        %v902 = vsub.f32 %v832, %v249
        %v903 = vsub.f32 %v837, %v250
        %v904 = vsub.f32 %v842, %v251
        %v905 = vsub.f32 %v847, %v252
        %v906 = vsub.f32 %v852, %v253
        %v907 = vsub.f32 %v857, %v254
        %v908 = vsub.f32 %v862, %v255
        %v909 = vsub.f32 %v867, %v256
        %v910 = vsub.f32 %v872, %v257
        %v911 = vsub.f32 %v877, %v258
        %v912 = vsub.f32 %v882, %v259
        %v913 = vsub.f32 %v887, %v260
        %v914 = vsub.f32 %v892, %v261
        %v915 = vsub.f32 %v897, %v262
        %v916 = vadd.f32 %v247, %v900
        %v917 = vadd.f32 %v248, %v901
        %v918 = vadd.f32 %v249, %v902
        %v919 = vadd.f32 %v250, %v903
        %v920 = vadd.f32 %v251, %v904
        %v921 = vadd.f32 %v252, %v905
        %v922 = vadd.f32 %v253, %v906
        %v923 = vadd.f32 %v254, %v907
        %v924 = vadd.f32 %v255, %v908
        %v925 = vadd.f32 %v256, %v909
        %v926 = vadd.f32 %v257, %v910
        %v927 = vadd.f32 %v258, %v911
        %v928 = vadd.f32 %v259, %v912
        %v929 = vadd.f32 %v260, %v913
        %v930 = vadd.f32 %v261, %v914
        %v931 = vadd.f32 %v262, %v915
        %932 = vst.msk [vmem:[%s245] sm:$0xff] %vm287, %v916
        %933 = vst.msk [vmem:[%s245 + $0x8] sm:$0xff] %vm287, %v917
        %934 = vst.msk [vmem:[%s245 + $0x10] sm:$0xff] %vm287, %v918
        %935 = vst.msk [vmem:[%s245 + $0x18] sm:$0xff] %vm287, %v919
        %936 = vst.msk [vmem:[%s245 + $0x20] sm:$0xff] %vm287, %v920
        %937 = vst.msk [vmem:[%s245 + $0x28] sm:$0xff] %vm287, %v921
        %938 = vst.msk [vmem:[%s245 + $0x30] sm:$0xff] %vm287, %v922
        %939 = vst.msk [vmem:[%s245 + $0x38] sm:$0xff] %vm287, %v923
        %940 = vst.msk [vmem:[%s245 + $0x40] sm:$0xff] %vm287, %v924
        %941 = vst.msk [vmem:[%s245 + $0x48] sm:$0xff] %vm287, %v925
        %942 = vst.msk [vmem:[%s245 + $0x50] sm:$0xff] %vm287, %v926
        %943 = vst.msk [vmem:[%s245 + $0x58] sm:$0xff] %vm287, %v927
        %944 = vst.msk [vmem:[%s245 + $0x60] sm:$0xff] %vm287, %v928
        %945 = vst.msk [vmem:[%s245 + $0x68] sm:$0xff] %vm287, %v929
        %946 = vst.msk [vmem:[%s245 + $0x70] sm:$0xff] %vm287, %v930
        %947 = vst.msk [vmem:[%s245 + $0x78] sm:$0xff] %vm287, %v931
        %v948 = vlaneseq
        %v949 = vshrl.u32 %v948, 7
        %v950 = vsub.s32 %v658, %v949
        %v951 = vrot.slane %v611, %v950
        %v952 = vadd.s32 %v658, 4294967288
        %v953 = vlaneseq
        %v954 = vshrl.u32 %v953, 7
        %v955 = vsub.s32 %v952, %v954
        %v956 = vrot.slane %v614, %v955
        %vm957 = vcmask 130112
        %v958 = vsel %vm957, %v956, %v951
        %v959 = vadd.s32 %v658, 4294967280
        %v960 = vlaneseq
        %v961 = vshrl.u32 %v960, 7
        %v962 = vsub.s32 %v959, %v961
        %v963 = vrot.slane %v617, %v962
        %vm964 = vcmask 195712
        %v965 = vsel %vm964, %v963, %v958
        %v966 = vadd.s32 %v658, 4294967272
        %v967 = vlaneseq
        %v968 = vshrl.u32 %v967, 7
        %v969 = vsub.s32 %v966, %v968
        %v970 = vrot.slane %v620, %v969
        %vm971 = vcmask 261312
        %v972 = vsel %vm971, %v970, %v965
        %v973 = vadd.s32 %v658, 4294967264
        %v974 = vlaneseq
        %v975 = vshrl.u32 %v974, 7
        %v976 = vsub.s32 %v973, %v975
        %v977 = vrot.slane %v623, %v976
        %vm978 = vcmask 326912
        %v979 = vsel %vm978, %v977, %v972
        %v980 = vadd.s32 %v658, 4294967256
        %v981 = vlaneseq
        %v982 = vshrl.u32 %v981, 7
        %v983 = vsub.s32 %v980, %v982
        %v984 = vrot.slane %v626, %v983
        %vm985 = vcmask 392512
        %v986 = vsel %vm985, %v984, %v979
        %v987 = vadd.s32 %v658, 4294967248
        %v988 = vlaneseq
        %v989 = vshrl.u32 %v988, 7
        %v990 = vsub.s32 %v987, %v989
        %v991 = vrot.slane %v629, %v990
        %vm992 = vcmask 458112
        %v993 = vsel %vm992, %v991, %v986
        %v994 = vadd.s32 %v658, 4294967240
        %v995 = vlaneseq
        %v996 = vshrl.u32 %v995, 7
        %v997 = vsub.s32 %v994, %v996
        %v998 = vrot.slane %v632, %v997
        %vm999 = vcmask 523712
        %v1000 = vsel %vm999, %v998, %v993
        %v1001 = vadd.s32 %v658, 4294967232
        %v1002 = vlaneseq
        %v1003 = vshrl.u32 %v1002, 7
        %v1004 = vsub.s32 %v1001, %v1003
        %v1005 = vrot.slane %v635, %v1004
        %vm1006 = vcmask 589312
        %v1007 = vsel %vm1006, %v1005, %v1000
        %v1008 = vadd.s32 %v658, 4294967224
        %v1009 = vlaneseq
        %v1010 = vshrl.u32 %v1009, 7
        %v1011 = vsub.s32 %v1008, %v1010
        %v1012 = vrot.slane %v638, %v1011
        %vm1013 = vcmask 654912
        %v1014 = vsel %vm1013, %v1012, %v1007
        %v1015 = vadd.s32 %v658, 4294967216
        %v1016 = vlaneseq
        %v1017 = vshrl.u32 %v1016, 7
        %v1018 = vsub.s32 %v1015, %v1017
        %v1019 = vrot.slane %v641, %v1018
        %vm1020 = vcmask 720512
        %v1021 = vsel %vm1020, %v1019, %v1014
        %v1022 = vadd.s32 %v658, 4294967208
        %v1023 = vlaneseq
        %v1024 = vshrl.u32 %v1023, 7
        %v1025 = vsub.s32 %v1022, %v1024
        %v1026 = vrot.slane %v644, %v1025
        %vm1027 = vcmask 786112
        %v1028 = vsel %vm1027, %v1026, %v1021
        %v1029 = vadd.s32 %v658, 4294967200
        %v1030 = vlaneseq
        %v1031 = vshrl.u32 %v1030, 7
        %v1032 = vsub.s32 %v1029, %v1031
        %v1033 = vrot.slane %v647, %v1032
        %vm1034 = vcmask 851712
        %v1035 = vsel %vm1034, %v1033, %v1028
        %v1036 = vadd.s32 %v658, 4294967192
        %v1037 = vlaneseq
        %v1038 = vshrl.u32 %v1037, 7
        %v1039 = vsub.s32 %v1036, %v1038
        %v1040 = vrot.slane %v650, %v1039
        %vm1041 = vcmask 917312
        %v1042 = vsel %vm1041, %v1040, %v1035
        %v1043 = vadd.s32 %v658, 4294967184
        %v1044 = vlaneseq
        %v1045 = vshrl.u32 %v1044, 7
        %v1046 = vsub.s32 %v1043, %v1045
        %v1047 = vrot.slane %v653, %v1046
        %vm1048 = vcmask 982912
        %v1049 = vsel %vm1048, %v1047, %v1042
        %v1050 = vadd.s32 %v658, 4294967176
        %v1051 = vlaneseq
        %v1052 = vshrl.u32 %v1051, 7
        %v1053 = vsub.s32 %v1050, %v1052
        %v1054 = vrot.slane %v656, %v1053
        %vm1055 = vcmask 1048512
        %v1056 = vsel %vm1055, %v1054, %v1049
        %1057 = vst [vmem:[%s228] sm:$0x1] %v1056
        %v1058 = vmul.f32 %v900, %v900
        %v1059 = vmul.f32 %v901, %v901
        %v1060 = vmul.f32 %v902, %v902
        %v1061 = vmul.f32 %v903, %v903
        %v1062 = vmul.f32 %v904, %v904
        %v1063 = vmul.f32 %v905, %v905
        %v1064 = vmul.f32 %v906, %v906
        %v1065 = vmul.f32 %v907, %v907
        %v1066 = vmul.f32 %v908, %v908
        %v1067 = vmul.f32 %v909, %v909
        %v1068 = vmul.f32 %v910, %v910
        %v1069 = vmul.f32 %v911, %v911
        %v1070 = vmul.f32 %v912, %v912
        %v1071 = vmul.f32 %v913, %v913
        %v1072 = vmul.f32 %v914, %v914
        %v1073 = vmul.f32 %v915, %v915
        %v1074 = vsel %vm287, %v1058, 0.0
        %v1075 = vsel %vm287, %v1059, 0.0
        %v1076 = vadd.f32 %v1074, %v1075
        %v1077 = vsel %vm287, %v1060, 0.0
        %v1078 = vadd.f32 %v1076, %v1077
        %v1079 = vsel %vm287, %v1061, 0.0
        %v1080 = vadd.f32 %v1078, %v1079
        %v1081 = vsel %vm287, %v1062, 0.0
        %v1082 = vadd.f32 %v1080, %v1081
        %v1083 = vsel %vm287, %v1063, 0.0
        %v1084 = vadd.f32 %v1082, %v1083
        %v1085 = vsel %vm287, %v1064, 0.0
        %v1086 = vadd.f32 %v1084, %v1085
        %v1087 = vsel %vm287, %v1065, 0.0
        %v1088 = vadd.f32 %v1086, %v1087
        %v1089 = vsel %vm287, %v1066, 0.0
        %v1090 = vadd.f32 %v1088, %v1089
        %v1091 = vsel %vm287, %v1067, 0.0
        %v1092 = vadd.f32 %v1090, %v1091
        %v1093 = vsel %vm287, %v1068, 0.0
        %v1094 = vadd.f32 %v1092, %v1093
        %v1095 = vsel %vm287, %v1069, 0.0
        %v1096 = vadd.f32 %v1094, %v1095
        %v1097 = vsel %vm287, %v1070, 0.0
        %v1098 = vadd.f32 %v1096, %v1097
        %v1099 = vsel %vm287, %v1071, 0.0
        %v1100 = vadd.f32 %v1098, %v1099
        %v1101 = vsel %vm287, %v1072, 0.0
        %v1102 = vadd.f32 %v1100, %v1101
        %v1103 = vsel %vm287, %v1073, 0.0
        %v1104 = vadd.f32 %v1102, %v1103
        %1105 = vadd.xlane.f32.xlu0 %v1104
        %v1106 = vpop.xlane.xlu0 %1105
        %v1107 = vrot.slane %v1106, 4
        %v1108 = vadd.f32 %v1106, %v1107
        %v1109 = vrot.slane %v1108, 2
        %v1110 = vadd.f32 %v1108, %v1109
        %v1111 = vrot.slane %v1110, 1
        %v1112 = vadd.f32 %v1110, %v1111
        %s1113 = vtos %v1112
        %v1114 = vstv %s1113
        %1115 = vst [vmem:[%s234] sm:$0x1] %v1114
        %s1116 = smul.u32 16, %s23
        %p1117 = scmp.lt.s32.totalorder %s1116, 63
        %s1118 = scalar_select %p1117, %s1116, 63
        %s1119 = smul.addr %s1118, 8
        %s1120 = scalar_lea.vmem %s3, %s1119
        %s1121 = sand.u32 %s125, 1
        %s1122 = scalar_lea.sflag [#allocation3], %s1121
        %s1123 = sand.u32 %s125, 1
        %s1124 = scalar_lea.vmem [#allocation2], %s1123
        %s1125 = sand.u32 %s151, 1
        %s1126 = scalar_lea.sflag [#allocation5], %s1125
        %s1127 = sand.u32 %s151, 1
        %s1128 = scalar_lea.vmem [#allocation4], %s1127
        // Predicated region
        $region33: #{tpu_custom_call.1} parent=31 // pred_check
          %p1129 = pneg %p109
        $region34: #{tpu_custom_call.1} parent=31 // pred_check_branch
          %1131 = sbr.rel (%p1129) target = $region36
        $region35: #{tpu_custom_call.1} parent=31 // pred_region
          %s1132 = smul.u32 16, %s23
        $region36: #{tpu_custom_call.1} parent=31 // pred_fallthru
          _
        // Predicated region
        $region37: #{tpu_custom_call.1} parent=31 // pred_check
          %p1133 = pneg %p135
        $region38: #{tpu_custom_call.1} parent=31 // pred_check_branch
          %1135 = sbr.rel (%p1133) target = $region40
        $region39: #{tpu_custom_call.1} parent=31 // pred_region
          %s1137 = ssub.s32 16, 16
          %1138 = vsyncadd %s1122, %s1137
          %s1139 = smul.addr %s23, 16
          %s1140 = scalar_lea.hbm %s4, %s1139
          %s1142 = sshll.u32 %s1124, 4
          %s1143 = int_to_ptr.vmem [resolvable:$true] %s1142
          %1145 = dma.vmem_to_hbm [thread:$0]  %s1143, 16, %s1140, %s1122
        $region40: #{tpu_custom_call.1} parent=31 // pred_fallthru
          _
        // Predicated region
        $region41: #{tpu_custom_call.1} parent=31 // pred_check
          %p1146 = pneg %p161
        $region42: #{tpu_custom_call.1} parent=31 // pred_check_branch
          %1148 = sbr.rel (%p1146) target = $region44
        $region43: #{tpu_custom_call.1} parent=31 // pred_region
          %s1150 = ssub.s32 16, 16
          %1151 = vsyncadd %s1126, %s1150
          %s1152 = smul.addr %s23, 16
          %s1153 = scalar_lea.hbm %s5, %s1152
          %s1155 = sshll.u32 %s1128, 4
          %s1156 = int_to_ptr.vmem [resolvable:$true] %s1155
          %1158 = dma.vmem_to_hbm [thread:$0]  %s1156, 16, %s1153, %s1126
        $region44: #{tpu_custom_call.1} parent=31 // pred_fallthru
          _
      $region32: #{tpu_custom_call.1} parent=5 // pred_fallthru
        _
      %p1159 = scmp.le.s32.totalorder 2, %s18
      // Predicated region
      $region45: #{tpu_custom_call.1} parent=5 // pred_check
        %p1160 = pneg %p1159
      $region46: #{tpu_custom_call.1} parent=5 // pred_check_branch
        %1162 = sbr.rel (%p1160) target = $region48
      $region47: #{tpu_custom_call.1} parent=5 // pred_region
        %s1163 = ssub.s32 %s18, 2
        // Predicated region
        $region49: #{tpu_custom_call.1} parent=47 // pred_check
          %p1164 = pneg %p115
        $region50: #{tpu_custom_call.1} parent=47 // pred_check_branch
          %1166 = sbr.rel (%p1164) target = $region52
        $region51: #{tpu_custom_call.1} parent=47 // pred_region
          %s1167 = smul.u32 16, %s24
          %p1168 = scmp.lt.s32.totalorder %s1167, 63
          %s1169 = scalar_select %p1168, %s1167, 63
          %s1170 = smul.addr %s1169, 8
          %s1171 = scalar_lea.vmem %s3, %s1170
        $region52: #{tpu_custom_call.1} parent=47 // pred_fallthru
          _
        // Predicated region
        $region53: #{tpu_custom_call.1} parent=47 // pred_check
          %p1172 = pneg %p141
        $region54: #{tpu_custom_call.1} parent=47 // pred_check_branch
          %1174 = sbr.rel (%p1172) target = $region56
        $region55: #{tpu_custom_call.1} parent=47 // pred_region
          %s1175 = sand.u32 %s126, 1
          %s1176 = scalar_lea.sflag [#allocation3], %s1175
          %s1177 = sand.u32 %s126, 1
          %s1178 = scalar_lea.vmem [#allocation2], %s1177
          %1179 = dma.done %s1176, 16
        $region56: #{tpu_custom_call.1} parent=47 // pred_fallthru
          _
        // Predicated region
        $region57: #{tpu_custom_call.1} parent=47 // pred_check
          %p1180 = pneg %p167
        $region58: #{tpu_custom_call.1} parent=47 // pred_check_branch
          %1182 = sbr.rel (%p1180) target = $region60
        $region59: #{tpu_custom_call.1} parent=47 // pred_region
          %s1183 = sand.u32 %s152, 1
          %s1184 = scalar_lea.sflag [#allocation5], %s1183
          %s1185 = sand.u32 %s152, 1
          %s1186 = scalar_lea.vmem [#allocation4], %s1185
          %1187 = dma.done %s1184, 16
        $region60: #{tpu_custom_call.1} parent=47 // pred_fallthru
          _
      $region48: #{tpu_custom_call.1} parent=5 // pred_fallthru
        _
    $region6: #{tpu_custom_call.1} parent=1 // loop_footer
      %s22 = sadd.s32 1, %s18
    $region7: #{tpu_custom_call.1} parent=1 // loop_footer_branch
      %17 = sbr.rel target = $region3
    $region8: #{tpu_custom_call.1} parent=1 // loop_exit
      _
    %1188 = vsyncpa [#allocation3], 1
    %s1189 = scalar_lea.sflag [#allocation3], 1
    %1190 = vsyncpa %s1189, 1
    %1191 = vsyncpa [#allocation5], 1
    %s1192 = scalar_lea.sflag [#allocation5], 1
    %1193 = vsyncpa %s1192, 1

</llo_original>
